<compile_context>
chip_gen: v7x
topology: tpu7x:2x2x1
jax: 0.10.0
libtpu: 0.0.40
codegen_flags: <defaults>
</compile_context>

<pallas_src>
import jax
import jax.numpy as jnp
from jax.experimental import pallas as pl
from jax.experimental.pallas import tpu as pltpu


def gcn_kernel(a_ref, m_ref, x_ref, w1_ref, b1_ref, w2_ref, b2_ref, out_ref):
    a = a_ref[0]          # (S, S)  bf16   block-diagonal normalized adjacency (G graphs)
    m = m_ref[0]          # (G, S)  f32    block-diagonal folded readout rows
    x = x_ref[0]          # (S, Fp) bf16   stacked node features of the G graphs

    # ---- GraphConv 1 for all G graphs at once:  A_bd @ (X @ W1) + b1, ReLU (f32) ----
    xw = jnp.dot(x, w1_ref[...], preferred_element_type=jnp.float32)            # (S, Hp) f32
    h1 = jnp.dot(a, xw.astype(jnp.bfloat16),
                 preferred_element_type=jnp.float32) + b1_ref[...]              # (S, Hp) f32
    h1 = jnp.maximum(h1, 0.0)

    # ---- GraphConv 2 + mean_nodes folded (per graph g):
    #      mean_nodes(A_g @ (H1_g @ W2) + b2) == (m_g @ H1_g) @ W2 + b2
    #      block-diag m makes this a single (G,S)@(S,Hp) matmul. f32 for accuracy. ----
    mh = jnp.dot(m, h1, preferred_element_type=jnp.float32)                     # (G, Hp) f32
    out = jnp.dot(mh, w2_ref[...], preferred_element_type=jnp.float32) + b2_ref[...]  # (G, Cp)

    out_ref[0] = out                                                            # (8,128)-aligned store


def gcn_forward(a_bd, m_bd, x_st, w1, b1, w2, b2):
    nb, S, _ = a_bd.shape          # nb grid steps, S = G * N rows per step
    G = m_bd.shape[1]
    Fp = x_st.shape[2]
    Hp = w1.shape[1]
    Cp = w2.shape[1]

    grid_spec = pltpu.PrefetchScalarGridSpec(
        num_scalar_prefetch=0,
        grid=(nb,),
        in_specs=[
            pl.BlockSpec((1, S, S), lambda b: (b, 0, 0)),    # block-diag A_hat (per step)
            pl.BlockSpec((1, G, S), lambda b: (b, 0, 0)),    # block-diag readout rows
            pl.BlockSpec((1, S, Fp), lambda b: (b, 0, 0)),   # stacked X
            pl.BlockSpec((Fp, Hp), lambda b: (0, 0)),        # W1 (constant index_map -> no re-DMA)
            pl.BlockSpec((1, Hp), lambda b: (0, 0)),         # b1
            pl.BlockSpec((Hp, Cp), lambda b: (0, 0)),        # W2
            pl.BlockSpec((1, Cp), lambda b: (0, 0)),         # b2
        ],
        out_specs=pl.BlockSpec((1, G, Cp), lambda b: (b, 0, 0)),
    )
    return pl.pallas_call(
        gcn_kernel,
        out_shape=jax.ShapeDtypeStruct((nb, G, Cp), jnp.float32),
        grid_spec=grid_spec,
        # independent grid steps -> "parallel" (shards across the 2 TCs on v7x megacore;
        # measured near-neutral on v5e/v6e). VMEM footprint is tiny; raise vmem_limit_bytes
        # only if S grows (see TODO above).
        compiler_params=pltpu.CompilerParams(dimension_semantics=("parallel",)),
    )(a_bd, m_bd, x_st, w1, b1, w2, b2)


def build_normalized_adjacency(src, dst, num_nodes):
    """Dense A_hat = D_in^{-1/2} A D_out^{-1/2}, A[dst, src]=1 (DGL norm='both',
    allow_zero_in_degree=True -> degrees clamped to min 1)."""
    a = jnp.zeros((num_nodes, num_nodes), jnp.float32)
    a = a.at[dst, src].set(1.0)
    out_deg = jnp.clip(a.sum(axis=0), 1.0, None)   # out-degree of each src node
    in_deg = jnp.clip(a.sum(axis=1), 1.0, None)    # in-degree of each dst node
    d_in = jax.lax.rsqrt(in_deg)[:, None]
    d_out = jax.lax.rsqrt(out_deg)[None, :]
    return d_in * a * d_out


def xavier_uniform(key, shape):
    fan_in, fan_out = shape
    bound = jnp.sqrt(6.0 / (fan_in + fan_out))
    return jax.random.uniform(key, shape, jnp.float32, -bound, bound)


def round_up(x, m):
    return (x + m - 1) // m * m


def pad_to(x, shape):
    pads = [(0, s - d) for s, d in zip(shape, x.shape)]
    return jnp.pad(x, pads)


def block_diag_adjacency(a_b, G):
    """(B, N, N) -> (B//G, G*N, G*N) block-diagonal."""
    B, N, _ = a_b.shape
    nb = B // G
    a_g = a_b.reshape(nb, G, N, N)
    out = jnp.zeros((nb, G * N, G * N), a_b.dtype)
    for g in range(G):
        out = out.at[:, g * N:(g + 1) * N, g * N:(g + 1) * N].set(a_g[:, g])
    return out


def block_diag_readout(m_b, G):
    """(B, N) folded readout rows -> (B//G, G, G*N) block-diagonal row slab."""
    B, N = m_b.shape
    nb = B // G
    m_g = m_b.reshape(nb, G, N)
    out = jnp.zeros((nb, G, G * N), m_b.dtype)
    for g in range(G):
        out = out.at[:, g, g * N:(g + 1) * N].set(m_g[:, g])
    return out


if __name__ == "__main__":
    # N nodes per graph, in_feats -> h_feats -> classes, B graphs total.
    N, IN_FEATS, H_FEATS, NUM_CLASSES = 16, 16, 32, 8
    B = 16                       # total graphs
    G = 8                        # graphs per grid step: G*N = 128 (MXU-native tile)
    assert B % G == 0 and (G * N) % 128 == 0

    LANE = 128
    S = G * N                           # 128 rows per grid step
    F_PAD = round_up(IN_FEATS, LANE)    # lane-dense feature dim
    H_PAD = round_up(H_FEATS, LANE)     # lane-dense hidden dim
    C_PAD = round_up(NUM_CLASSES, LANE)  # lane-dense output dim (full-width store)

    key = jax.random.PRNGKey(0)
    k_x, k_e, k_w1, k_w2 = jax.random.split(key, 4)

    # B deterministic random graphs (32 directed edges each) and node features.
    edge_keys = jax.random.split(k_e, 2 * B)
    a_list = []
    for g in range(B):
        src = jax.random.randint(edge_keys[2 * g], (32,), 0, N)
        dst = jax.random.randint(edge_keys[2 * g + 1], (32,), 0, N)
        a_list.append(build_normalized_adjacency(src, dst, N))
    a_b = jnp.stack(a_list)                          # (B, N, N) f32
    # Folded readout row per graph: (1/N) * 1^T A_hat  (column sums / N).
    m_b = a_b.sum(axis=1) / N                        # (B, N) f32

    x_b = jax.random.normal(k_x, (B, N, IN_FEATS), jnp.float32)

    # GraphConv params: xavier-uniform weights, zero biases (DGL reset_parameters).
    w1 = xavier_uniform(k_w1, (IN_FEATS, H_FEATS))
    b1 = jnp.zeros((1, H_FEATS), jnp.float32)
    w2 = xavier_uniform(k_w2, (H_FEATS, NUM_CLASSES))
    b2 = jnp.zeros((1, NUM_CLASSES), jnp.float32)

    # ---- Pack G graphs per grid step ----
    # Block-diagonal A_hat / readout rows; stacked X.  A, X, W1 -> bf16 (f32 acc in
    # kernel); readout rows, W2 and biases stay f32 (tiny, keeps accuracy).
    a_bd = block_diag_adjacency(a_b, G).astype(jnp.bfloat16)            # (B//G, S, S)
    m_bd = block_diag_readout(m_b, G)                                   # (B//G, G, S) f32
    x_st = pad_to(x_b.reshape(B // G, S, IN_FEATS),
                  (B // G, S, F_PAD)).astype(jnp.bfloat16)              # (B//G, S, Fp)
    w1_p = pad_to(w1, (F_PAD, H_PAD)).astype(jnp.bfloat16)
    b1_p = pad_to(b1, (1, H_PAD))
    w2_p = pad_to(w2, (H_PAD, C_PAD))                                   # f32
    b2_p = pad_to(b2, (1, C_PAD))

    out_p = gcn_forward(a_bd, m_bd, x_st, w1_p, b1_p, w2_p, b2_p)       # (B//G, G, C_PAD) f32
    jax.block_until_ready(out_p)
    out = out_p.reshape(B, C_PAD)[:, :NUM_CLASSES]                      # (B, NUM_CLASSES)

    # Pure-JAX f32 reference (tolerance loosened due to bf16 A/X/W1 MXU operands).
    def ref_one(a, x):
        h1 = jnp.maximum(a @ (x @ w1) + b1, 0.0)
        return jnp.mean(a @ (h1 @ w2) + b2, axis=0)

    ref = jax.vmap(ref_one)(a_b, x_b)                                   # (B, NUM_CLASSES)

    assert out.shape == (B, NUM_CLASSES)
    assert jnp.allclose(out, ref, atol=5e-2, rtol=5e-2), (out, ref)

    print("KERNEL_OK")
</pallas_src>

<mosaic_0001>
module attributes {stable_mosaic.version = 11 : i64} {
  func.func @gcn_kernel(%arg0: i32, %arg1: memref<1x128x128xbf16, #tpu.memory_space<vmem>>, %arg2: memref<1x8x128xf32, #tpu.memory_space<vmem>>, %arg3: memref<1x128x128xbf16, #tpu.memory_space<vmem>>, %arg4: memref<128x128xbf16, #tpu.memory_space<vmem>>, %arg5: memref<1x128xf32, #tpu.memory_space<vmem>>, %arg6: memref<128x128xf32, #tpu.memory_space<vmem>>, %arg7: memref<1x128xf32, #tpu.memory_space<vmem>>, %arg8: memref<1x8x128xf32, #tpu.memory_space<vmem>>) attributes {dimension_semantics = [#tpu.dimension_semantics<parallel>], iteration_bounds = array<i64: 2>, scalar_prefetch = 0 : i64, scratch_operands = 0 : i64, tpu.core_type = #tpu.core_type<tc>, window_params = [{transform_indices = @transform_0, window_bounds = array<i64: 1, 128, 128>}, {transform_indices = @transform_1, window_bounds = array<i64: 1, 8, 128>}, {transform_indices = @transform_2, window_bounds = array<i64: 1, 128, 128>}, {pipeline_mode = #tpu.pipeline_mode<synchronous>, transform_indices = @transform_3, window_bounds = array<i64: 128, 128>}, {pipeline_mode = #tpu.pipeline_mode<synchronous>, transform_indices = @transform_4, window_bounds = array<i64: 1, 128>}, {pipeline_mode = #tpu.pipeline_mode<synchronous>, transform_indices = @transform_5, window_bounds = array<i64: 128, 128>}, {pipeline_mode = #tpu.pipeline_mode<synchronous>, transform_indices = @transform_6, window_bounds = array<i64: 1, 128>}, {transform_indices = @transform_7, window_bounds = array<i64: 1, 8, 128>}]} {
    %c0 = arith.constant 0 : index
    %c0_0 = arith.constant 0 : index
    %c0_1 = arith.constant 0 : index
    %0 = vector.load %arg1[%c0, %c0_0, %c0_1] : memref<1x128x128xbf16, #tpu.memory_space<vmem>>, vector<1x128x128xbf16>
    %1 = vector.shape_cast %0 : vector<1x128x128xbf16> to vector<128x128xbf16>
    %c0_2 = arith.constant 0 : index
    %c0_3 = arith.constant 0 : index
    %c0_4 = arith.constant 0 : index
    %2 = vector.load %arg2[%c0_2, %c0_3, %c0_4] : memref<1x8x128xf32, #tpu.memory_space<vmem>>, vector<1x8x128xf32>
    %3 = vector.shape_cast %2 : vector<1x8x128xf32> to vector<8x128xf32>
    %c0_5 = arith.constant 0 : index
    %c0_6 = arith.constant 0 : index
    %c0_7 = arith.constant 0 : index
    %4 = vector.load %arg3[%c0_5, %c0_6, %c0_7] : memref<1x128x128xbf16, #tpu.memory_space<vmem>>, vector<1x128x128xbf16>
    %5 = vector.shape_cast %4 : vector<1x128x128xbf16> to vector<128x128xbf16>
    %c0_8 = arith.constant 0 : index
    %c0_9 = arith.constant 0 : index
    %6 = vector.load %arg4[%c0_8, %c0_9] : memref<128x128xbf16, #tpu.memory_space<vmem>>, vector<128x128xbf16>
    %cst = arith.constant dense<0.000000e+00> : vector<128x128xf32>
    %7 = tpu.matmul %5, %6, %cst {dimension_numbers = #tpu.dot_dimension_numbers<[1], [0], [0], [1], [0, 0, 1, 1], [], []>} : vector<128x128xbf16>, vector<128x128xbf16>, vector<128x128xf32> -> vector<128x128xf32>
    %8 = arith.truncf %7 : vector<128x128xf32> to vector<128x128xbf16>
    %cst_10 = arith.constant dense<0.000000e+00> : vector<128x128xf32>
    %9 = tpu.matmul %1, %8, %cst_10 {dimension_numbers = #tpu.dot_dimension_numbers<[1], [0], [0], [1], [0, 0, 1, 1], [], []>} : vector<128x128xbf16>, vector<128x128xbf16>, vector<128x128xf32> -> vector<128x128xf32>
    %c0_11 = arith.constant 0 : index
    %c0_12 = arith.constant 0 : index
    %10 = vector.load %arg5[%c0_11, %c0_12] : memref<1x128xf32, #tpu.memory_space<vmem>>, vector<1x128xf32>
    %11 = vector.broadcast %10 : vector<1x128xf32> to vector<128x128xf32>
    %12 = arith.addf %9, %11 : vector<128x128xf32>
    %cst_13 = arith.constant 0.000000e+00 : f32
    %13 = vector.broadcast %cst_13 : f32 to vector<128x128xf32>
    %14 = arith.maximumf %12, %13 : vector<128x128xf32>
    %cst_14 = arith.constant dense<0.000000e+00> : vector<8x128xf32>
    %15 = tpu.matmul %3, %14, %cst_14 {dimension_numbers = #tpu.dot_dimension_numbers<[1], [0], [0], [1], [0, 0, 1, 1], [], []>} : vector<8x128xf32>, vector<128x128xf32>, vector<8x128xf32> -> vector<8x128xf32>
    %c0_15 = arith.constant 0 : index
    %c0_16 = arith.constant 0 : index
    %16 = vector.load %arg6[%c0_15, %c0_16] : memref<128x128xf32, #tpu.memory_space<vmem>>, vector<128x128xf32>
    %cst_17 = arith.constant dense<0.000000e+00> : vector<8x128xf32>
    %17 = tpu.matmul %15, %16, %cst_17 {dimension_numbers = #tpu.dot_dimension_numbers<[1], [0], [0], [1], [0, 0, 1, 1], [], []>} : vector<8x128xf32>, vector<128x128xf32>, vector<8x128xf32> -> vector<8x128xf32>
    %c0_18 = arith.constant 0 : index
    %c0_19 = arith.constant 0 : index
    %18 = vector.load %arg7[%c0_18, %c0_19] : memref<1x128xf32, #tpu.memory_space<vmem>>, vector<1x128xf32>
    %19 = vector.broadcast %18 : vector<1x128xf32> to vector<8x128xf32>
    %20 = arith.addf %17, %19 : vector<8x128xf32>
    %c0_20 = arith.constant 0 : index
    %c0_21 = arith.constant 0 : index
    %c0_22 = arith.constant 0 : index
    %21 = vector.load %arg8[%c0_20, %c0_21, %c0_22] : memref<1x8x128xf32, #tpu.memory_space<vmem>>, vector<1x8x128xf32>
    %22 = vector.shape_cast %21 : vector<1x8x128xf32> to vector<8x128xf32>
    %23 = vector.shape_cast %20 : vector<8x128xf32> to vector<1x8x128xf32>
    tpu.vector_store %arg8[%c0_20, %c0_21, %c0_22], %23 {strides = array<i32>} : memref<1x8x128xf32, #tpu.memory_space<vmem>>, vector<1x8x128xf32>,
    return
  }
  func.func @transform_0(%arg0: i32) -> (i32, i32, i32) {
    %c0_i32 = arith.constant 0 : i32
    %c0_i32_0 = arith.constant 0 : i32
    %c0_i32_1 = arith.constant 0 : i32
    return %arg0, %c0_i32, %c0_i32_0 : i32, i32, i32
  }
  func.func @transform_1(%arg0: i32) -> (i32, i32, i32) {
    %c0_i32 = arith.constant 0 : i32
    %c0_i32_0 = arith.constant 0 : i32
    %c0_i32_1 = arith.constant 0 : i32
    return %arg0, %c0_i32, %c0_i32_0 : i32, i32, i32
  }
  func.func @transform_2(%arg0: i32) -> (i32, i32, i32) {
    %c0_i32 = arith.constant 0 : i32
    %c0_i32_0 = arith.constant 0 : i32
    %c0_i32_1 = arith.constant 0 : i32
    return %arg0, %c0_i32, %c0_i32_0 : i32, i32, i32
  }
  func.func @transform_3(%arg0: i32) -> (i32, i32) {
    %c0_i32 = arith.constant 0 : i32
    %c0_i32_0 = arith.constant 0 : i32
    %c0_i32_1 = arith.constant 0 : i32
    return %c0_i32, %c0_i32_0 : i32, i32
  }
  func.func @transform_4(%arg0: i32) -> (i32, i32) {
    %c0_i32 = arith.constant 0 : i32
    %c0_i32_0 = arith.constant 0 : i32
    %c0_i32_1 = arith.constant 0 : i32
    return %c0_i32, %c0_i32_0 : i32, i32
  }
  func.func @transform_5(%arg0: i32) -> (i32, i32) {
    %c0_i32 = arith.constant 0 : i32
    %c0_i32_0 = arith.constant 0 : i32
    %c0_i32_1 = arith.constant 0 : i32
    return %c0_i32, %c0_i32_0 : i32, i32
  }
  func.func @transform_6(%arg0: i32) -> (i32, i32) {
    %c0_i32 = arith.constant 0 : i32
    %c0_i32_0 = arith.constant 0 : i32
    %c0_i32_1 = arith.constant 0 : i32
    return %c0_i32, %c0_i32_0 : i32, i32
  }
  func.func @transform_7(%arg0: i32) -> (i32, i32, i32) {
    %c0_i32 = arith.constant 0 : i32
    %c0_i32_0 = arith.constant 0 : i32
    %c0_i32_1 = arith.constant 0 : i32
    return %arg0, %c0_i32, %c0_i32_0 : i32, i32, i32
  }
}

</mosaic_0001>

<llo_original>
// kernel: tpu_custom_call.1
$region0: #{tpu_custom_call.1}
  #allocation0 [shape = 'u32[]', space=smem, size = 0x4, offset = 0x4, fixed_abs, tag = 'smem constant byte address 0x4 - core index']
  #allocation1 [shape = 'u32[144,128]{1,0:T(1,128)}', space=vmem, size = 0x12000, scoped, tag = 'internal scratch']
  %s0 = inlined_call_operand.hbm [shape: bf16[2,128,128], index: 0, kind: input, shape index: {}]
  %s1 = inlined_call_operand.hbm [shape: f32[2,8,128], index: 1, kind: input, shape index: {}]
  %s2 = inlined_call_operand.hbm [shape: bf16[2,128,128], index: 2, kind: input, shape index: {}]
  %s3 = inlined_call_operand.hbm [shape: bf16[128,128], index: 3, kind: input, shape index: {}]
  %s4 = inlined_call_operand.vmem [shape: f32[1,128], index: 4, kind: input, shape index: {}]
  %s5 = inlined_call_operand.hbm [shape: f32[128,128], index: 5, kind: input, shape index: {}]
  %s6 = inlined_call_operand.vmem [shape: f32[1,128], index: 6, kind: input, shape index: {}]
  %s7 = inlined_call_operand.hbm [shape: f32[2,8,128], index: 7, kind: output, shape index: {}]
  %s8 = sld [smem:[#allocation0]]
  $region81: #{tpu_custom_call.1} parent=0
    _
  %s10 = ssub.s32 1, %s8
  %s11 = scalar_select 0, %s10, %s8
  $region1: #{tpu_custom_call.1} parent=0
    #allocation2 [shape = 'u8[65536]{0}', space=vmem, size = 0x10000, scoped, tag = 'input window, operand 0']
    #allocation3 [shape = 's32[2]{0}', space=sflag, size = 0x8, scoped, tag = 'scoped memory for tpu_custom_call.1']
    #allocation4 [shape = 's32[2]{0}', space=sflag, size = 0x8, scoped, tag = 'scoped memory for tpu_custom_call.1']
    #allocation5 [shape = 'u8[8192]{0}', space=vmem, size = 0x2000, scoped, tag = 'input window, operand 1']
    #allocation6 [shape = 's32[2]{0}', space=sflag, size = 0x8, scoped, tag = 'scoped memory for tpu_custom_call.1']
    #allocation7 [shape = 'u8[65536]{0}', space=vmem, size = 0x10000, scoped, tag = 'input window, operand 2']
    #allocation8 [shape = 'u8[32768]{0}', space=vmem, size = 0x8000, scoped, tag = 'input window, operand 3, single buffered']
    #allocation9 [shape = 's32[1]{0}', space=sflag, size = 0x4, scoped, tag = 'scoped memory for tpu_custom_call.1']
    #allocation10 [shape = 'u8[65536]{0}', space=vmem, size = 0x10000, scoped, tag = 'input window, operand 5, single buffered']
    #allocation11 [shape = 'u8[8192]{0}', space=vmem, size = 0x2000, scoped, tag = 'output window, operand 0']
    %12 = vsyncpa [#allocation3], 0
    %s13 = scalar_lea.sflag [#allocation3], 1
    %14 = vsyncpa %s13, 0
    %15 = vsyncpa [#allocation6], 0
    %s16 = scalar_lea.sflag [#allocation6], 1
    %17 = vsyncpa %s16, 0
    %18 = vsyncpa [#allocation9], 0
    %19 = vsyncpa [#allocation4], 0
    %s20 = scalar_lea.sflag [#allocation4], 1
    %21 = vsyncpa %s20, 0
    loop: start=0, step=1, limit=4
    $region2: #{tpu_custom_call.1} parent=1 // loop_pre_header
      _
    $region3: #{tpu_custom_call.1} parent=1 // loop_header
      %s23 = sphi 0, %s27
      %p24 = scmp.ge.s32.totalorder %s23, 4
      %s33 = sphi 0, %s35
      %s36 = sphi 0, %s33
      %s37 = sphi 0, %s36
      %s53 = sphi 0, %s37
      %s59 = sphi 0, %s61
      %s62 = sphi 0, %s59
      %s63 = sphi 0, %s62
      %s79 = sphi 0, %s63
      %s85 = sphi 0, %s87
      %s88 = sphi 0, %s85
      %s89 = sphi 0, %s88
      %s105 = sphi 0, %s89
      %s109 = sphi 0, %s109
      %s111 = sphi 0, %s109
      %s112 = sphi 0, %s111
      %s126 = sphi 0, %s112
      %s130 = sphi 0, %s130
      %s132 = sphi 0, %s130
      %s133 = sphi 0, %s132
      %s147 = sphi 0, %s133
      %s151 = sphi 0, %s151
      %s153 = sphi 0, %s151
      %s154 = sphi 0, %s153
      %s168 = sphi 0, %s154
      %s172 = sphi 0, %s172
      %s174 = sphi 0, %s172
      %s175 = sphi 0, %s174
      %s189 = sphi 0, %s175
      %s195 = sphi 0, %s197
      %s198 = sphi 0, %s195
      %s199 = sphi 0, %s198
      %s215 = sphi 0, %s199
    $region4: #{tpu_custom_call.1} parent=1 // loop_header_branch
      %26 = sbr.rel (%p24) target = $region8
    $region5: #{tpu_custom_call.1} parent=1 // loop_body
      %s28 = ssub.s32 %s23, 1
      %s29 = ssub.s32 %s23, 2
      %s30 = sadd.s32 %s23, 1
      %s31 = ssub.s32 %s23, %s30
      %p32 = scmp.eq.s32.totalorder %s31, 0
      %s34 = sadd.s32 %s33, 1
      %s35 = scalar_select %p32, %s33, %s34
      %p38 = pneg %p32
      %p39 = scmp.eq.s32.totalorder %s23, 1
      %p40 = por %p38, %p39
      %p41 = scmp.ne.s32.totalorder %s33, %s36
      %p42 = scmp.eq.s32.totalorder %s23, 0
      %p43 = por %p41, %p42
      %p44 = scmp.ne.s32.totalorder %s33, %s36
      %p45 = scmp.eq.s32.totalorder %s28, 1
      %p46 = por %p44, %p45
      %p47 = scmp.ne.s32.totalorder %s36, %s37
      %p48 = scmp.eq.s32.totalorder %s28, 0
      %p49 = por %p47, %p48
      %p50 = scmp.ne.s32.totalorder %s36, %s37
      %p51 = scmp.eq.s32.totalorder %s29, 1
      %p52 = por %p50, %p51
      %p54 = scmp.ne.s32.totalorder %s37, %s53
      %p55 = scmp.eq.s32.totalorder %s29, 0
      %p56 = por %p54, %p55
      %s57 = ssub.s32 %s23, %s30
      %p58 = scmp.eq.s32.totalorder %s57, 0
      %s60 = sadd.s32 %s59, 1
      %s61 = scalar_select %p58, %s59, %s60
      %p64 = pneg %p58
      %p65 = scmp.eq.s32.totalorder %s23, 1
      %p66 = por %p64, %p65
      %p67 = scmp.ne.s32.totalorder %s59, %s62
      %p68 = scmp.eq.s32.totalorder %s23, 0
      %p69 = por %p67, %p68
      %p70 = scmp.ne.s32.totalorder %s59, %s62
      %p71 = scmp.eq.s32.totalorder %s28, 1
      %p72 = por %p70, %p71
      %p73 = scmp.ne.s32.totalorder %s62, %s63
      %p74 = scmp.eq.s32.totalorder %s28, 0
      %p75 = por %p73, %p74
      %p76 = scmp.ne.s32.totalorder %s62, %s63
      %p77 = scmp.eq.s32.totalorder %s29, 1
      %p78 = por %p76, %p77
      %p80 = scmp.ne.s32.totalorder %s63, %s79
      %p81 = scmp.eq.s32.totalorder %s29, 0
      %p82 = por %p80, %p81
      %s83 = ssub.s32 %s23, %s30
      %p84 = scmp.eq.s32.totalorder %s83, 0
      %s86 = sadd.s32 %s85, 1
      %s87 = scalar_select %p84, %s85, %s86
      %p90 = pneg %p84
      %p91 = scmp.eq.s32.totalorder %s23, 1
      %p92 = por %p90, %p91
      %p93 = scmp.ne.s32.totalorder %s85, %s88
      %p94 = scmp.eq.s32.totalorder %s23, 0
      %p95 = por %p93, %p94
      %p96 = scmp.ne.s32.totalorder %s85, %s88
      %p97 = scmp.eq.s32.totalorder %s28, 1
      %p98 = por %p96, %p97
      %p99 = scmp.ne.s32.totalorder %s88, %s89
      %p100 = scmp.eq.s32.totalorder %s28, 0
      %p101 = por %p99, %p100
      %p102 = scmp.ne.s32.totalorder %s88, %s89
      %p103 = scmp.eq.s32.totalorder %s29, 1
      %p104 = por %p102, %p103
      %p106 = scmp.ne.s32.totalorder %s89, %s105
      %p107 = scmp.eq.s32.totalorder %s29, 0
      %p108 = por %p106, %p107
      %s110 = sadd.s32 %s109, 1
      %p113 = scmp.eq.s32.totalorder %s23, 1
      %p114 = scmp.ne.s32.totalorder %s109, %s111
      %p115 = scmp.eq.s32.totalorder %s23, 0
      %p116 = por %p114, %p115
      %p117 = scmp.ne.s32.totalorder %s109, %s111
      %p118 = scmp.eq.s32.totalorder %s28, 1
      %p119 = por %p117, %p118
      %p120 = scmp.ne.s32.totalorder %s111, %s112
      %p121 = scmp.eq.s32.totalorder %s28, 0
      %p122 = por %p120, %p121
      %p123 = scmp.ne.s32.totalorder %s111, %s112
      %p124 = scmp.eq.s32.totalorder %s29, 1
      %p125 = por %p123, %p124
      %p127 = scmp.ne.s32.totalorder %s112, %s126
      %p128 = scmp.eq.s32.totalorder %s29, 0
      %p129 = por %p127, %p128
      %s131 = sadd.s32 %s130, 1
      %p134 = scmp.eq.s32.totalorder %s23, 1
      %p135 = scmp.ne.s32.totalorder %s130, %s132
      %p136 = scmp.eq.s32.totalorder %s23, 0
      %p137 = por %p135, %p136
      %p138 = scmp.ne.s32.totalorder %s130, %s132
      %p139 = scmp.eq.s32.totalorder %s28, 1
      %p140 = por %p138, %p139
      %p141 = scmp.ne.s32.totalorder %s132, %s133
      %p142 = scmp.eq.s32.totalorder %s28, 0
      %p143 = por %p141, %p142
      %p144 = scmp.ne.s32.totalorder %s132, %s133
      %p145 = scmp.eq.s32.totalorder %s29, 1
      %p146 = por %p144, %p145
      %p148 = scmp.ne.s32.totalorder %s133, %s147
      %p149 = scmp.eq.s32.totalorder %s29, 0
      %p150 = por %p148, %p149
      %s152 = sadd.s32 %s151, 1
      %p155 = scmp.eq.s32.totalorder %s23, 1
      %p156 = scmp.ne.s32.totalorder %s151, %s153
      %p157 = scmp.eq.s32.totalorder %s23, 0
      %p158 = por %p156, %p157
      %p159 = scmp.ne.s32.totalorder %s151, %s153
      %p160 = scmp.eq.s32.totalorder %s28, 1
      %p161 = por %p159, %p160
      %p162 = scmp.ne.s32.totalorder %s153, %s154
      %p163 = scmp.eq.s32.totalorder %s28, 0
      %p164 = por %p162, %p163
      %p165 = scmp.ne.s32.totalorder %s153, %s154
      %p166 = scmp.eq.s32.totalorder %s29, 1
      %p167 = por %p165, %p166
      %p169 = scmp.ne.s32.totalorder %s154, %s168
      %p170 = scmp.eq.s32.totalorder %s29, 0
      %p171 = por %p169, %p170
      %s173 = sadd.s32 %s172, 1
      %p176 = scmp.eq.s32.totalorder %s23, 1
      %p177 = scmp.ne.s32.totalorder %s172, %s174
      %p178 = scmp.eq.s32.totalorder %s23, 0
      %p179 = por %p177, %p178
      %p180 = scmp.ne.s32.totalorder %s172, %s174
      %p181 = scmp.eq.s32.totalorder %s28, 1
      %p182 = por %p180, %p181
      %p183 = scmp.ne.s32.totalorder %s174, %s175
      %p184 = scmp.eq.s32.totalorder %s28, 0
      %p185 = por %p183, %p184
      %p186 = scmp.ne.s32.totalorder %s174, %s175
      %p187 = scmp.eq.s32.totalorder %s29, 1
      %p188 = por %p186, %p187
      %p190 = scmp.ne.s32.totalorder %s175, %s189
      %p191 = scmp.eq.s32.totalorder %s29, 0
      %p192 = por %p190, %p191
      %s193 = ssub.s32 %s23, %s30
      %p194 = scmp.eq.s32.totalorder %s193, 0
      %s196 = sadd.s32 %s195, 1
      %s197 = scalar_select %p194, %s195, %s196
      %p200 = pneg %p194
      %p201 = scmp.eq.s32.totalorder %s23, 1
      %p202 = por %p200, %p201
      %p203 = scmp.ne.s32.totalorder %s195, %s198
      %p204 = scmp.eq.s32.totalorder %s23, 0
      %p205 = por %p203, %p204
      %p206 = scmp.ne.s32.totalorder %s195, %s198
      %p207 = scmp.eq.s32.totalorder %s28, 1
      %p208 = por %p206, %p207
      %p209 = scmp.ne.s32.totalorder %s198, %s199
      %p210 = scmp.eq.s32.totalorder %s28, 0
      %p211 = por %p209, %p210
      %p212 = scmp.ne.s32.totalorder %s198, %s199
      %p213 = scmp.eq.s32.totalorder %s29, 1
      %p214 = por %p212, %p213
      %p216 = scmp.ne.s32.totalorder %s199, %s215
      %p217 = scmp.eq.s32.totalorder %s29, 0
      %p218 = por %p216, %p217
      %p219 = scmp.le.s32.totalorder 1, %s23
      %p220 = scmp.lt.s32.totalorder %s23, 3
      %p221 = pnand %p219, %p220
      %p222 = pneg %p221
      // Predicated region
      $region9: #{tpu_custom_call.1} parent=5 // pred_check
        _
      $region10: #{tpu_custom_call.1} parent=5 // pred_check_branch
        %224 = sbr.rel (%p221) target = $region12
      $region11: #{tpu_custom_call.1} parent=5 // pred_region
        %s225 = ssub.s32 %s23, 1
        // Predicated region
        $region13: #{tpu_custom_call.1} parent=11 // pred_check
          %p226 = pneg %p122
        $region14: #{tpu_custom_call.1} parent=11 // pred_check_branch
          %228 = sbr.rel (%p226) target = $region16
        $region15: #{tpu_custom_call.1} parent=11 // pred_region
          %s230 = ssub.s32 1024, 1024
          %231 = vsyncadd [#allocation9], %s230
          %s232 = sshll.u32 [#allocation8], 4
          %s233 = int_to_ptr.vmem [resolvable:$true] %s232
          %238 = dma.hbm_to_vmem [thread:$0]  %s3, 1024, %s233, [#allocation9], 64, 64, 4
        $region16: #{tpu_custom_call.1} parent=11 // pred_fallthru
          _
        // Predicated region
        $region17: #{tpu_custom_call.1} parent=11 // pred_check
          %p239 = pneg %p143
        $region18: #{tpu_custom_call.1} parent=11 // pred_check_branch
          %241 = sbr.rel (%p239) target = $region20
        $region19: #{tpu_custom_call.1} parent=11 // pred_region
          _
        $region20: #{tpu_custom_call.1} parent=11 // pred_fallthru
          _
        // Predicated region
        $region21: #{tpu_custom_call.1} parent=11 // pred_check
          %p242 = pneg %p164
        $region22: #{tpu_custom_call.1} parent=11 // pred_check_branch
          %244 = sbr.rel (%p242) target = $region24
        $region23: #{tpu_custom_call.1} parent=11 // pred_region
          %s246 = ssub.s32 2048, 2048
          %247 = vsyncadd [#allocation9], %s246
          %s248 = sshll.u32 [#allocation10], 4
          %s249 = int_to_ptr.vmem [resolvable:$true] %s248
          %254 = dma.hbm_to_vmem [thread:$0]  %s5, 2048, %s249, [#allocation9], 128, 128, 8
        $region24: #{tpu_custom_call.1} parent=11 // pred_fallthru
          _
        // Predicated region
        $region25: #{tpu_custom_call.1} parent=11 // pred_check
          %p255 = pneg %p185
        $region26: #{tpu_custom_call.1} parent=11 // pred_check_branch
          %257 = sbr.rel (%p255) target = $region28
        $region27: #{tpu_custom_call.1} parent=11 // pred_region
          _
        $region28: #{tpu_custom_call.1} parent=11 // pred_fallthru
          _
      $region12: #{tpu_custom_call.1} parent=5 // pred_fallthru
        _
      %p258 = scmp.lt.s32.totalorder %s23, 2
      // Predicated region
      $region29: #{tpu_custom_call.1} parent=5 // pred_check
        %p259 = pneg %p258
      $region30: #{tpu_custom_call.1} parent=5 // pred_check_branch
        %261 = sbr.rel (%p259) target = $region32
      $region31: #{tpu_custom_call.1} parent=5 // pred_region
        // Predicated region
        $region33: #{tpu_custom_call.1} parent=31 // pred_check
          %p262 = pneg %p43
        $region34: #{tpu_custom_call.1} parent=31 // pred_check_branch
          %264 = sbr.rel (%p262) target = $region36
        $region35: #{tpu_custom_call.1} parent=31 // pred_region
          %s265 = sand.u32 %s33, 1
          %s266 = scalar_lea.sflag [#allocation3], %s265
          %s267 = sand.u32 %s33, 1
          %s268 = smul.addr %s267, 64
          %s269 = scalar_lea.vmem [#allocation2], %s268
          %s271 = ssub.s32 1024, 1024
          %272 = vsyncadd %s266, %s271
          %s273 = smul.addr %s23, 16
          %s274 = smul.addr %s273, 64
          %s275 = scalar_lea.hbm %s0, %s274
          %s276 = sshll.u32 %s269, 4
          %s277 = int_to_ptr.vmem [resolvable:$true] %s276
          %282 = dma.hbm_to_vmem [thread:$0]  %s275, 1024, %s277, %s266, 64, 64, 4
        $region36: #{tpu_custom_call.1} parent=31 // pred_fallthru
          _
        // Predicated region
        $region37: #{tpu_custom_call.1} parent=31 // pred_check
          %p283 = pneg %p69
        $region38: #{tpu_custom_call.1} parent=31 // pred_check_branch
          %285 = sbr.rel (%p283) target = $region40
        $region39: #{tpu_custom_call.1} parent=31 // pred_region
          %s286 = sand.u32 %s23, 1
          %s287 = scalar_lea.sflag [#allocation6], %s286
          %s288 = sand.u32 %s59, 1
          %s289 = smul.addr %s288, 8
          %s290 = scalar_lea.vmem [#allocation5], %s289
          %s292 = ssub.s32 128, 128
          %293 = vsyncadd %s287, %s292
          %s294 = smul.addr %s23, 128
          %s295 = scalar_lea.hbm %s1, %s294
          %s297 = sshll.u32 %s290, 4
          %s298 = int_to_ptr.vmem [resolvable:$true] %s297
          %300 = dma.hbm_to_vmem [thread:$0]  %s295, 128, %s298, %s287
        $region40: #{tpu_custom_call.1} parent=31 // pred_fallthru
          _
        // Predicated region
        $region41: #{tpu_custom_call.1} parent=31 // pred_check
          %p301 = pneg %p95
        $region42: #{tpu_custom_call.1} parent=31 // pred_check_branch
          %303 = sbr.rel (%p301) target = $region44
        $region43: #{tpu_custom_call.1} parent=31 // pred_region
          %s304 = sand.u32 %s23, 1
          %s305 = scalar_lea.sflag [#allocation6], %s304
          %s306 = sand.u32 %s85, 1
          %s307 = smul.addr %s306, 64
          %s308 = scalar_lea.vmem [#allocation7], %s307
          %s310 = ssub.s32 1024, 1024
          %311 = vsyncadd %s305, %s310
          %s312 = smul.addr %s23, 16
          %s313 = smul.addr %s312, 64
          %s314 = scalar_lea.hbm %s2, %s313
          %s315 = sshll.u32 %s308, 4
          %s316 = int_to_ptr.vmem [resolvable:$true] %s315
          %321 = dma.hbm_to_vmem [thread:$0]  %s314, 1024, %s316, %s305, 64, 64, 4
        $region44: #{tpu_custom_call.1} parent=31 // pred_fallthru
          _
      $region32: #{tpu_custom_call.1} parent=5 // pred_fallthru
        _
      %p322 = scmp.le.s32.totalorder 1, %s23
      %p323 = scmp.lt.s32.totalorder %s23, 3
      %p324 = pnand %p322, %p323
      %p325 = pneg %p324
      // Predicated region
      $region45: #{tpu_custom_call.1} parent=5 // pred_check
        _
      $region46: #{tpu_custom_call.1} parent=5 // pred_check_branch
        %327 = sbr.rel (%p324) target = $region48
      $region47: #{tpu_custom_call.1} parent=5 // pred_region
        %s328 = ssub.s32 %s23, 1
        %s329 = sand.u32 %s36, 1
        %s330 = scalar_lea.sflag [#allocation3], %s329
        %s331 = sand.u32 %s36, 1
        %s332 = smul.addr %s331, 64
        %s333 = scalar_lea.vmem [#allocation2], %s332
        // Predicated region
        $region49: #{tpu_custom_call.1} parent=47 // pred_check
          %p334 = pneg %p49
        $region50: #{tpu_custom_call.1} parent=47 // pred_check_branch
          %336 = sbr.rel (%p334) target = $region52
        $region51: #{tpu_custom_call.1} parent=47 // pred_region
          %337 = dma.done %s330, 1024
        $region52: #{tpu_custom_call.1} parent=47 // pred_fallthru
          _
        %s338 = sand.u32 %s28, 1
        %s339 = scalar_lea.sflag [#allocation6], %s338
        %s340 = sand.u32 %s62, 1
        %s341 = smul.addr %s340, 8
        %s342 = scalar_lea.vmem [#allocation5], %s341
        // Predicated region
        $region53: #{tpu_custom_call.1} parent=47 // pred_check
          %p343 = pneg %p75
        $region54: #{tpu_custom_call.1} parent=47 // pred_check_branch
          %345 = sbr.rel (%p343) target = $region56
        $region55: #{tpu_custom_call.1} parent=47 // pred_region
          %346 = dma.done %s339, 128
        $region56: #{tpu_custom_call.1} parent=47 // pred_fallthru
          _
        %s347 = sand.u32 %s28, 1
        %s348 = scalar_lea.sflag [#allocation6], %s347
        %s349 = sand.u32 %s88, 1
        %s350 = smul.addr %s349, 64
        %s351 = scalar_lea.vmem [#allocation7], %s350
        // Predicated region
        $region57: #{tpu_custom_call.1} parent=47 // pred_check
          %p352 = pneg %p101
        $region58: #{tpu_custom_call.1} parent=47 // pred_check_branch
          %354 = sbr.rel (%p352) target = $region60
        $region59: #{tpu_custom_call.1} parent=47 // pred_region
          %355 = dma.done %s348, 1024
        $region60: #{tpu_custom_call.1} parent=47 // pred_fallthru
          _
        // Predicated region
        $region61: #{tpu_custom_call.1} parent=47 // pred_check
          %p356 = pneg %p122
        $region62: #{tpu_custom_call.1} parent=47 // pred_check_branch
          %358 = sbr.rel (%p356) target = $region64
        $region63: #{tpu_custom_call.1} parent=47 // pred_region
          %359 = dma.done [#allocation9], 1024
        $region64: #{tpu_custom_call.1} parent=47 // pred_fallthru
          _
        // Predicated region
        $region65: #{tpu_custom_call.1} parent=47 // pred_check
          %p360 = pneg %p164
        $region66: #{tpu_custom_call.1} parent=47 // pred_check_branch
          %362 = sbr.rel (%p360) target = $region68
        $region67: #{tpu_custom_call.1} parent=47 // pred_region
          %363 = dma.done [#allocation9], 2048
        $region68: #{tpu_custom_call.1} parent=47 // pred_fallthru
          _
        %s364 = sand.u32 %s36, 1
        %s365 = scalar_lea.sflag [#allocation3], %s364
        %s366 = sand.u32 %s36, 1
        %s367 = smul.addr %s366, 64
        %s368 = scalar_lea.vmem [#allocation2], %s367
        %p369 = pneg %p49
        %p370 = pneg %p46
        %s371 = sand.u32 %s28, 1
        %s372 = scalar_lea.sflag [#allocation6], %s371
        %s373 = sand.u32 %s62, 1
        %s374 = smul.addr %s373, 8
        %s375 = scalar_lea.vmem [#allocation5], %s374
        %p376 = pneg %p75
        %p377 = pneg %p72
        %s378 = sand.u32 %s28, 1
        %s379 = scalar_lea.sflag [#allocation6], %s378
        %s380 = sand.u32 %s88, 1
        %s381 = smul.addr %s380, 64
        %s382 = scalar_lea.vmem [#allocation7], %s381
        %p383 = pneg %p101
        %p384 = pneg %p98
        %p385 = pneg %p122
        %p386 = pneg %p119
        %p387 = pneg %p143
        %p388 = pneg %p140
        %p389 = pneg %p164
        %p390 = pneg %p161
        %p391 = pneg %p185
        %p392 = pneg %p182
        %p393 = pneg %p211
        %p394 = pneg %p208
        %s395 = sand.u32 %s198, 1
        %s396 = scalar_lea.sflag [#allocation4], %s395
        %s397 = sand.u32 %s198, 1
        %s398 = smul.addr %s397, 8
        %s399 = scalar_lea.vmem [#allocation11], %s398
        %v401 = vld [vmem:[%s333] sm:$0xf]
        %v402 = vld [vmem:[%s333 + $0x4] sm:$0xf]
        %v403 = vld [vmem:[%s333 + $0x8] sm:$0xf]
        %v404 = vld [vmem:[%s333 + $0xc] sm:$0xf]
        %v405 = vld [vmem:[%s333 + $0x10] sm:$0xf]
        %v406 = vld [vmem:[%s333 + $0x14] sm:$0xf]
        %v407 = vld [vmem:[%s333 + $0x18] sm:$0xf]
        %v408 = vld [vmem:[%s333 + $0x1c] sm:$0xf]
        %v409 = vld [vmem:[%s333 + $0x20] sm:$0xf]
        %v410 = vld [vmem:[%s333 + $0x24] sm:$0xf]
        %v411 = vld [vmem:[%s333 + $0x28] sm:$0xf]
        %v412 = vld [vmem:[%s333 + $0x2c] sm:$0xf]
        %v413 = vld [vmem:[%s333 + $0x30] sm:$0xf]
        %v414 = vld [vmem:[%s333 + $0x34] sm:$0xf]
        %v415 = vld [vmem:[%s333 + $0x38] sm:$0xf]
        %v416 = vld [vmem:[%s333 + $0x3c] sm:$0xf]
        %v417 = vld [vmem:[%s342] sm:$0xff]
        %v418 = vld [vmem:[%s351] sm:$0xf]
        %v419 = vld [vmem:[%s351 + $0x4] sm:$0xf]
        %v420 = vld [vmem:[%s351 + $0x8] sm:$0xf]
        %v421 = vld [vmem:[%s351 + $0xc] sm:$0xf]
        %v422 = vld [vmem:[%s351 + $0x10] sm:$0xf]
        %v423 = vld [vmem:[%s351 + $0x14] sm:$0xf]
        %v424 = vld [vmem:[%s351 + $0x18] sm:$0xf]
        %v425 = vld [vmem:[%s351 + $0x1c] sm:$0xf]
        %v426 = vld [vmem:[%s351 + $0x20] sm:$0xf]
        %v427 = vld [vmem:[%s351 + $0x24] sm:$0xf]
        %v428 = vld [vmem:[%s351 + $0x28] sm:$0xf]
        %v429 = vld [vmem:[%s351 + $0x2c] sm:$0xf]
        %v430 = vld [vmem:[%s351 + $0x30] sm:$0xf]
        %v431 = vld [vmem:[%s351 + $0x34] sm:$0xf]
        %v432 = vld [vmem:[%s351 + $0x38] sm:$0xf]
        %v433 = vld [vmem:[%s351 + $0x3c] sm:$0xf]
        %v434 = vld [vmem:[#allocation8] sm:$0xf]
        %v435 = vld [vmem:[#allocation8 + $0x4] sm:$0xf]
        %v436 = vld [vmem:[#allocation8 + $0x8] sm:$0xf]
        %v437 = vld [vmem:[#allocation8 + $0xc] sm:$0xf]
        %v438 = vld [vmem:[#allocation8 + $0x10] sm:$0xf]
        %v439 = vld [vmem:[#allocation8 + $0x14] sm:$0xf]
        %v440 = vld [vmem:[#allocation8 + $0x18] sm:$0xf]
        %v441 = vld [vmem:[#allocation8 + $0x1c] sm:$0xf]
        %v442 = vld [vmem:[#allocation8 + $0x20] sm:$0xf]
        %v443 = vld [vmem:[#allocation8 + $0x24] sm:$0xf]
        %v444 = vld [vmem:[#allocation8 + $0x28] sm:$0xf]
        %v445 = vld [vmem:[#allocation8 + $0x2c] sm:$0xf]
        %v446 = vld [vmem:[#allocation8 + $0x30] sm:$0xf]
        %v447 = vld [vmem:[#allocation8 + $0x34] sm:$0xf]
        %v448 = vld [vmem:[#allocation8 + $0x38] sm:$0xf]
        %v449 = vld [vmem:[#allocation8 + $0x3c] sm:$0xf]
        %v466 = vunpack.c.l.b16 %v418
        %v467 = vunpack.c.l.b16 %v419
        %v468 = vunpack.c.l.b16 %v420
        %v469 = vunpack.c.l.b16 %v421
        %v470 = vunpack.c.l.b16 %v422
        %v471 = vunpack.c.l.b16 %v423
        %v472 = vunpack.c.l.b16 %v424
        %v473 = vunpack.c.l.b16 %v425
        %v474 = vunpack.c.l.b16 %v426
        %v475 = vunpack.c.l.b16 %v427
        %v476 = vunpack.c.l.b16 %v428
        %v477 = vunpack.c.l.b16 %v429
        %v478 = vunpack.c.l.b16 %v430
        %v479 = vunpack.c.l.b16 %v431
        %v480 = vunpack.c.l.b16 %v432
        %v481 = vunpack.c.l.b16 %v433
        %v482 = vpack.c.b16 %v467, %v466
        %v483 = vpack.c.b16 %v469, %v468
        %v484 = vpack.c.b16 %v471, %v470
        %v485 = vpack.c.b16 %v473, %v472
        %v486 = vpack.c.b16 %v475, %v474
        %v487 = vpack.c.b16 %v477, %v476
        %v488 = vpack.c.b16 %v479, %v478
        %v489 = vpack.c.b16 %v481, %v480
        %v514 = vunpack.c.l.b16 %v434
        %v515 = vunpack.c.l.b16 %v435
        %v516 = vunpack.c.l.b16 %v436
        %v517 = vunpack.c.l.b16 %v437
        %v518 = vunpack.c.l.b16 %v438
        %v519 = vunpack.c.l.b16 %v439
        %v520 = vunpack.c.l.b16 %v440
        %v521 = vunpack.c.l.b16 %v441
        %v522 = vunpack.c.l.b16 %v442
        %v523 = vunpack.c.l.b16 %v443
        %v524 = vunpack.c.l.b16 %v444
        %v525 = vunpack.c.l.b16 %v445
        %v526 = vunpack.c.l.b16 %v446
        %v527 = vunpack.c.l.b16 %v447
        %v528 = vunpack.c.l.b16 %v448
        %v529 = vunpack.c.l.b16 %v449
        %v530 = vpack.c.b16 %v515, %v514
        %v531 = vpack.c.b16 %v517, %v516
        %v532 = vpack.c.b16 %v519, %v518
        %v533 = vpack.c.b16 %v521, %v520
        %v534 = vpack.c.b16 %v523, %v522
        %v535 = vpack.c.b16 %v525, %v524
        %v536 = vpack.c.b16 %v527, %v526
        %v537 = vpack.c.b16 %v529, %v528
        %546 = vmatprep.subr.bf16.mxu0 0
        %547 = vmatpush1.bf16.msra.mxu0 %v530
        %548 = vmatprep.subr.bf16.mxu0 0
        %549 = vmatpush1.bf16.msra.mxu0 %v531
        %550 = vmatprep.subr.bf16.mxu0 0
        %551 = vmatpush1.bf16.msra.mxu0 %v532
        %552 = vmatprep.subr.bf16.mxu0 0
        %553 = vmatpush1.bf16.msra.mxu0 %v533
        %554 = vmatprep.subr.bf16.mxu0 0
        %555 = vmatpush1.bf16.msra.mxu0 %v534
        %556 = vmatprep.subr.bf16.mxu0 0
        %557 = vmatpush1.bf16.msra.mxu0 %v535
        %558 = vmatprep.subr.bf16.mxu0 0
        %559 = vmatpush1.bf16.msra.mxu0 %v536
        %560 = vmatprep.subr.bf16.mxu0 0
        %561 = vmatpush1.bf16.msra.mxu0 %v537
        %562 = vmatprep.subr.bf16.mxu0 0
        %563 = vmatpush1.bf16.msra.mxu0 0
        %564 = vmatprep.subr.bf16.mxu0 0
        %565 = vmatpush1.bf16.msra.mxu0 0
        %566 = vmatprep.subr.bf16.mxu0 0
        %567 = vmatpush1.bf16.msra.mxu0 0
        %568 = vmatprep.subr.bf16.mxu0 0
        %569 = vmatpush1.bf16.msra.mxu0 0
        %570 = vmatprep.subr.bf16.mxu0 0
        %571 = vmatpush1.bf16.msra.mxu0 0
        %572 = vmatprep.subr.bf16.mxu0 0
        %573 = vmatpush1.bf16.msra.mxu0 0
        %574 = vmatprep.subr.bf16.mxu0 0
        %575 = vmatpush1.bf16.msra.mxu0 0
        %576 = vmatprep.subr.bf16.mxu0 0
        %577 = vmatpush1.bf16.msra.mxu0 0
        %578 = vmatprep.mubr.bf16.mxu0 0
        %579 = vmatmul.mubr.bf16.gmra.mrb[0].mxu0 %v482
        %v580 = vpop.f32.mrb[0].mxu0
        %v581 = vadd.f32 0.0, %v580
        %v582 = vpop.f32.mrb[0].mxu0
        %v583 = vpop.f32.mrb[0].mxu0
        %v584 = vadd.f32 0.0, %v583
        %v585 = vpop.f32.mrb[0].mxu0
        %586 = vmatprep.mubr.bf16.mxu0 0
        %587 = vmatmul.mubr.bf16.gmra.mrb[0].mxu0 %v483
        %v588 = vpop.f32.mrb[0].mxu0
        %v589 = vadd.f32 0.0, %v588
        %v590 = vpop.f32.mrb[0].mxu0
        %v591 = vpop.f32.mrb[0].mxu0
        %v592 = vadd.f32 0.0, %v591
        %v593 = vpop.f32.mrb[0].mxu0
        %594 = vmatprep.mubr.bf16.mxu0 0
        %595 = vmatmul.mubr.bf16.gmra.mrb[0].mxu0 %v484
        %v596 = vpop.f32.mrb[0].mxu0
        %v597 = vadd.f32 0.0, %v596
        %v598 = vpop.f32.mrb[0].mxu0
        %v599 = vpop.f32.mrb[0].mxu0
        %v600 = vadd.f32 0.0, %v599
        %v601 = vpop.f32.mrb[0].mxu0
        %602 = vmatprep.mubr.bf16.mxu0 0
        %603 = vmatmul.mubr.bf16.gmra.mrb[0].mxu0 %v485
        %v604 = vpop.f32.mrb[0].mxu0
        %v605 = vadd.f32 0.0, %v604
        %v606 = vpop.f32.mrb[0].mxu0
        %v607 = vpop.f32.mrb[0].mxu0
        %v608 = vadd.f32 0.0, %v607
        %v609 = vpop.f32.mrb[0].mxu0
        %610 = vmatprep.mubr.bf16.mxu0 0
        %611 = vmatmul.mubr.bf16.gmra.mrb[0].mxu0 %v486
        %v612 = vpop.f32.mrb[0].mxu0
        %v613 = vadd.f32 0.0, %v612
        %v614 = vpop.f32.mrb[0].mxu0
        %v615 = vpop.f32.mrb[0].mxu0
        %v616 = vadd.f32 0.0, %v615
        %v617 = vpop.f32.mrb[0].mxu0
        %618 = vmatprep.mubr.bf16.mxu0 0
        %619 = vmatmul.mubr.bf16.gmra.mrb[0].mxu0 %v487
        %v620 = vpop.f32.mrb[0].mxu0
        %v621 = vadd.f32 0.0, %v620
        %v622 = vpop.f32.mrb[0].mxu0
        %v623 = vpop.f32.mrb[0].mxu0
        %v624 = vadd.f32 0.0, %v623
        %v625 = vpop.f32.mrb[0].mxu0
        %626 = vmatprep.mubr.bf16.mxu0 0
        %627 = vmatmul.mubr.bf16.gmra.mrb[0].mxu0 %v488
        %v628 = vpop.f32.mrb[0].mxu0
        %v629 = vadd.f32 0.0, %v628
        %v630 = vpop.f32.mrb[0].mxu0
        %v631 = vpop.f32.mrb[0].mxu0
        %v632 = vadd.f32 0.0, %v631
        %v633 = vpop.f32.mrb[0].mxu0
        %634 = vmatprep.mubr.bf16.mxu0 0
        %635 = vmatmul.mubr.bf16.gmra.mrb[0].mxu0 %v489
        %v636 = vpop.f32.mrb[0].mxu0
        %v637 = vadd.f32 0.0, %v636
        %v638 = vpop.f32.mrb[0].mxu0
        %v639 = vpop.f32.mrb[0].mxu0
        %v640 = vadd.f32 0.0, %v639
        %v641 = vpop.f32.mrb[0].mxu0
        %642 = vdwg.mxu0
        %v643 = vpack.c.bf16 %v584, %v581
        %v644 = vpack.c.bf16 %v592, %v589
        %v645 = vpack.c.bf16 %v600, %v597
        %v646 = vpack.c.bf16 %v608, %v605
        %v647 = vpack.c.bf16 %v616, %v613
        %v648 = vpack.c.bf16 %v624, %v621
        %v649 = vpack.c.bf16 %v632, %v629
        %v650 = vpack.c.bf16 %v640, %v637
        %v651 = vld [vmem:[%s4] sm:$0x1]
        %v653 = vlaneseq
        %v654 = vshrl.u32 %v653, 7
        %v655 = vsub.s32 0, %v654
        %v656 = vrot.slane %v651, %v655
        %v674 = vunpack.c.l.b16 %v401
        %v675 = vunpack.c.l.b16 %v402
        %v676 = vunpack.c.l.b16 %v403
        %v677 = vunpack.c.l.b16 %v404
        %v678 = vunpack.c.l.b16 %v405
        %v679 = vunpack.c.l.b16 %v406
        %v680 = vunpack.c.l.b16 %v407
        %v681 = vunpack.c.l.b16 %v408
        %v682 = vunpack.c.l.b16 %v409
        %v683 = vunpack.c.l.b16 %v410
        %v684 = vunpack.c.l.b16 %v411
        %v685 = vunpack.c.l.b16 %v412
        %v686 = vunpack.c.l.b16 %v413
        %v687 = vunpack.c.l.b16 %v414
        %v688 = vunpack.c.l.b16 %v415
        %v689 = vunpack.c.l.b16 %v416
        %v690 = vpack.c.b16 %v675, %v674
        %v691 = vpack.c.b16 %v677, %v676
        %v692 = vpack.c.b16 %v679, %v678
        %v693 = vpack.c.b16 %v681, %v680
        %v694 = vpack.c.b16 %v683, %v682
        %v695 = vpack.c.b16 %v685, %v684
        %v696 = vpack.c.b16 %v687, %v686
        %v697 = vpack.c.b16 %v689, %v688
        %706 = vmatprep.subr.bf16.mxu0 0
        %707 = vmatpush1.bf16.msra.mxu0 %v643
        %708 = vmatprep.subr.bf16.mxu0 0
        %709 = vmatpush1.bf16.msra.mxu0 %v644
        %710 = vmatprep.subr.bf16.mxu0 0
        %711 = vmatpush1.bf16.msra.mxu0 %v645
        %712 = vmatprep.subr.bf16.mxu0 0
        %713 = vmatpush1.bf16.msra.mxu0 %v646
        %714 = vmatprep.subr.bf16.mxu0 0
        %715 = vmatpush1.bf16.msra.mxu0 %v647
        %716 = vmatprep.subr.bf16.mxu0 0
        %717 = vmatpush1.bf16.msra.mxu0 %v648
        %718 = vmatprep.subr.bf16.mxu0 0
        %719 = vmatpush1.bf16.msra.mxu0 %v649
        %720 = vmatprep.subr.bf16.mxu0 0
        %721 = vmatpush1.bf16.msra.mxu0 %v650
        %722 = vmatprep.subr.bf16.mxu0 0
        %723 = vmatpush1.bf16.msra.mxu0 0
        %724 = vmatprep.subr.bf16.mxu0 0
        %725 = vmatpush1.bf16.msra.mxu0 0
        %726 = vmatprep.subr.bf16.mxu0 0
        %727 = vmatpush1.bf16.msra.mxu0 0
        %728 = vmatprep.subr.bf16.mxu0 0
        %729 = vmatpush1.bf16.msra.mxu0 0
        %730 = vmatprep.subr.bf16.mxu0 0
        %731 = vmatpush1.bf16.msra.mxu0 0
        %732 = vmatprep.subr.bf16.mxu0 0
        %733 = vmatpush1.bf16.msra.mxu0 0
        %734 = vmatprep.subr.bf16.mxu0 0
        %735 = vmatpush1.bf16.msra.mxu0 0
        %736 = vmatprep.subr.bf16.mxu0 0
        %737 = vmatpush1.bf16.msra.mxu0 0
        %738 = vmatprep.mubr.bf16.mxu0 0
        %739 = vmatmul.mubr.bf16.gmra.mrb[0].mxu0 %v690
        %v740 = vpop.f32.mrb[0].mxu0
        %v741 = vadd.f32 %v656, %v740
        %v742 = vpop.f32.mrb[0].mxu0
        %v743 = vpop.f32.mrb[0].mxu0
        %v744 = vadd.f32 %v656, %v743
        %v745 = vpop.f32.mrb[0].mxu0
        %746 = vmatprep.mubr.bf16.mxu0 0
        %747 = vmatmul.mubr.bf16.gmra.mrb[0].mxu0 %v691
        %v748 = vpop.f32.mrb[0].mxu0
        %v749 = vadd.f32 %v656, %v748
        %v750 = vpop.f32.mrb[0].mxu0
        %v751 = vpop.f32.mrb[0].mxu0
        %v752 = vadd.f32 %v656, %v751
        %v753 = vpop.f32.mrb[0].mxu0
        %754 = vmatprep.mubr.bf16.mxu0 0
        %755 = vmatmul.mubr.bf16.gmra.mrb[0].mxu0 %v692
        %v756 = vpop.f32.mrb[0].mxu0
        %v757 = vadd.f32 %v656, %v756
        %v758 = vpop.f32.mrb[0].mxu0
        %v759 = vpop.f32.mrb[0].mxu0
        %v760 = vadd.f32 %v656, %v759
        %v761 = vpop.f32.mrb[0].mxu0
        %762 = vmatprep.mubr.bf16.mxu0 0
        %763 = vmatmul.mubr.bf16.gmra.mrb[0].mxu0 %v693
        %v764 = vpop.f32.mrb[0].mxu0
        %v765 = vadd.f32 %v656, %v764
        %v766 = vpop.f32.mrb[0].mxu0
        %v767 = vpop.f32.mrb[0].mxu0
        %v768 = vadd.f32 %v656, %v767
        %v769 = vpop.f32.mrb[0].mxu0
        %770 = vmatprep.mubr.bf16.mxu0 0
        %771 = vmatmul.mubr.bf16.gmra.mrb[0].mxu0 %v694
        %v772 = vpop.f32.mrb[0].mxu0
        %v773 = vadd.f32 %v656, %v772
        %v774 = vpop.f32.mrb[0].mxu0
        %v775 = vpop.f32.mrb[0].mxu0
        %v776 = vadd.f32 %v656, %v775
        %v777 = vpop.f32.mrb[0].mxu0
        %778 = vmatprep.mubr.bf16.mxu0 0
        %779 = vmatmul.mubr.bf16.gmra.mrb[0].mxu0 %v695
        %v780 = vpop.f32.mrb[0].mxu0
        %v781 = vadd.f32 %v656, %v780
        %v782 = vpop.f32.mrb[0].mxu0
        %v783 = vpop.f32.mrb[0].mxu0
        %v784 = vadd.f32 %v656, %v783
        %v785 = vpop.f32.mrb[0].mxu0
        %786 = vmatprep.mubr.bf16.mxu0 0
        %787 = vmatmul.mubr.bf16.gmra.mrb[0].mxu0 %v696
        %v788 = vpop.f32.mrb[0].mxu0
        %v789 = vadd.f32 %v656, %v788
        %v790 = vpop.f32.mrb[0].mxu0
        %v791 = vpop.f32.mrb[0].mxu0
        %v792 = vadd.f32 %v656, %v791
        %v793 = vpop.f32.mrb[0].mxu0
        %794 = vmatprep.mubr.bf16.mxu0 0
        %795 = vmatmul.mubr.bf16.gmra.mrb[0].mxu0 %v697
        %v796 = vpop.f32.mrb[0].mxu0
        %v797 = vadd.f32 %v656, %v796
        %v798 = vpop.f32.mrb[0].mxu0
        %v799 = vpop.f32.mrb[0].mxu0
        %v800 = vadd.f32 %v656, %v799
        %v801 = vpop.f32.mrb[0].mxu0
        %802 = vdwg.mxu0
        %v803 = vmax.f32 %v741, 0.0
        %v804 = vmax.f32 %v744, 0.0
        %v805 = vmax.f32 %v749, 0.0
        %v806 = vmax.f32 %v752, 0.0
        %v807 = vmax.f32 %v757, 0.0
        %v808 = vmax.f32 %v760, 0.0
        %v809 = vmax.f32 %v765, 0.0
        %v810 = vmax.f32 %v768, 0.0
        %v811 = vmax.f32 %v773, 0.0
        %v812 = vmax.f32 %v776, 0.0
        %v813 = vmax.f32 %v781, 0.0
        %v814 = vmax.f32 %v784, 0.0
        %v815 = vmax.f32 %v789, 0.0
        %v816 = vmax.f32 %v792, 0.0
        %v817 = vmax.f32 %v797, 0.0
        %v818 = vmax.f32 %v800, 0.0
        %819 = vmatprep.subr.mxu0 0.0
        %820 = vmatpush1.msra.mxu0 %v803
        %821 = vmatprep.subr.mxu0 0.0
        %822 = vmatpush1.msra.mxu0 %v804
        %823 = vmatprep.subr.mxu0 0.0
        %824 = vmatpush1.msra.mxu0 %v805
        %825 = vmatprep.subr.mxu0 0.0
        %826 = vmatpush1.msra.mxu0 %v806
        %827 = vmatprep.subr.mxu0 0.0
        %828 = vmatpush1.msra.mxu0 %v807
        %829 = vmatprep.subr.mxu0 0.0
        %830 = vmatpush1.msra.mxu0 %v808
        %831 = vmatprep.subr.mxu0 0.0
        %832 = vmatpush1.msra.mxu0 %v809
        %833 = vmatprep.subr.mxu0 0.0
        %834 = vmatpush1.msra.mxu0 %v810
        %835 = vmatprep.subr.mxu0 0.0
        %836 = vmatpush1.msra.mxu0 %v811
        %837 = vmatprep.subr.mxu0 0.0
        %838 = vmatpush1.msra.mxu0 %v812
        %839 = vmatprep.subr.mxu0 0.0
        %840 = vmatpush1.msra.mxu0 %v813
        %841 = vmatprep.subr.mxu0 0.0
        %842 = vmatpush1.msra.mxu0 %v814
        %843 = vmatprep.subr.mxu0 0.0
        %844 = vmatpush1.msra.mxu0 %v815
        %845 = vmatprep.subr.mxu0 0.0
        %846 = vmatpush1.msra.mxu0 %v816
        %847 = vmatprep.subr.mxu0 0.0
        %848 = vmatpush1.msra.mxu0 %v817
        %849 = vmatprep.subr.mxu0 0.0
        %850 = vmatpush1.msra.mxu0 %v818
        %851 = vmatprep.subr.mxu0 0.0
        %852 = vmatpush1.msra.mxu0 0.0
        %853 = vmatprep.subr.mxu0 0.0
        %854 = vmatpush1.msra.mxu0 0.0
        %855 = vmatprep.subr.mxu0 0.0
        %856 = vmatpush1.msra.mxu0 0.0
        %857 = vmatprep.subr.mxu0 0.0
        %858 = vmatpush1.msra.mxu0 0.0
        %859 = vmatprep.subr.mxu0 0.0
        %860 = vmatpush1.msra.mxu0 0.0
        %861 = vmatprep.subr.mxu0 0.0
        %862 = vmatpush1.msra.mxu0 0.0
        %863 = vmatprep.subr.mxu0 0.0
        %864 = vmatpush1.msra.mxu0 0.0
        %865 = vmatprep.subr.mxu0 0.0
        %866 = vmatpush1.msra.mxu0 0.0
        %867 = vmatprep.subr.mxu0 0.0
        %868 = vmatpush1.msra.mxu0 0.0
        %869 = vmatprep.subr.mxu0 0.0
        %870 = vmatpush1.msra.mxu0 0.0
        %871 = vmatprep.subr.mxu0 0.0
        %872 = vmatpush1.msra.mxu0 0.0
        %873 = vmatprep.subr.mxu0 0.0
        %874 = vmatpush1.msra.mxu0 0.0
        %875 = vmatprep.subr.mxu0 0.0
        %876 = vmatpush1.msra.mxu0 0.0
        %877 = vmatprep.subr.mxu0 0.0
        %878 = vmatpush1.msra.mxu0 0.0
        %879 = vmatprep.subr.mxu0 0.0
        %880 = vmatpush1.msra.mxu0 0.0
        %881 = vmatprep.subr.mxu0 0.0
        %882 = vmatpush1.msra.mxu0 0.0
        %883 = vmatprep.mubr.f32.mxu0 0.0
        %884 = vmatmul.mubr.f32.gmra.mrb[0].mxu0 %v417
        %v885 = vpop.f32.mrb[0].mxu0
        %v886 = vadd.f32 0.0, %v885
        %v887 = vpop.f32.mrb[0].mxu0
        %888 = vdwg.mxu0
        %v889 = vld [vmem:[#allocation10] sm:$0xff]
        %v890 = vld [vmem:[#allocation10 + $0x8] sm:$0xff]
        %v891 = vld [vmem:[#allocation10 + $0x10] sm:$0xff]
        %v892 = vld [vmem:[#allocation10 + $0x18] sm:$0xff]
        %v893 = vld [vmem:[#allocation10 + $0x20] sm:$0xff]
        %v894 = vld [vmem:[#allocation10 + $0x28] sm:$0xff]
        %v895 = vld [vmem:[#allocation10 + $0x30] sm:$0xff]
        %v896 = vld [vmem:[#allocation10 + $0x38] sm:$0xff]
        %v897 = vld [vmem:[#allocation10 + $0x40] sm:$0xff]
        %v898 = vld [vmem:[#allocation10 + $0x48] sm:$0xff]
        %v899 = vld [vmem:[#allocation10 + $0x50] sm:$0xff]
        %v900 = vld [vmem:[#allocation10 + $0x58] sm:$0xff]
        %v901 = vld [vmem:[#allocation10 + $0x60] sm:$0xff]
        %v902 = vld [vmem:[#allocation10 + $0x68] sm:$0xff]
        %v903 = vld [vmem:[#allocation10 + $0x70] sm:$0xff]
        %v904 = vld [vmem:[#allocation10 + $0x78] sm:$0xff]
        %v905 = vld [vmem:[%s6] sm:$0x1]
        %v907 = vlaneseq
        %v908 = vshrl.u32 %v907, 7
        %v909 = vsub.s32 0, %v908
        %v910 = vrot.slane %v905, %v909
        %912 = vmatprep.subr.mxu0 0.0
        %913 = vmatpush1.msra.mxu0 %v889
        %914 = vmatprep.subr.mxu0 0.0
        %915 = vmatpush1.msra.mxu0 %v890
        %916 = vmatprep.subr.mxu0 0.0
        %917 = vmatpush1.msra.mxu0 %v891
        %918 = vmatprep.subr.mxu0 0.0
        %919 = vmatpush1.msra.mxu0 %v892
        %920 = vmatprep.subr.mxu0 0.0
        %921 = vmatpush1.msra.mxu0 %v893
        %922 = vmatprep.subr.mxu0 0.0
        %923 = vmatpush1.msra.mxu0 %v894
        %924 = vmatprep.subr.mxu0 0.0
        %925 = vmatpush1.msra.mxu0 %v895
        %926 = vmatprep.subr.mxu0 0.0
        %927 = vmatpush1.msra.mxu0 %v896
        %928 = vmatprep.subr.mxu0 0.0
        %929 = vmatpush1.msra.mxu0 %v897
        %930 = vmatprep.subr.mxu0 0.0
        %931 = vmatpush1.msra.mxu0 %v898
        %932 = vmatprep.subr.mxu0 0.0
        %933 = vmatpush1.msra.mxu0 %v899
        %934 = vmatprep.subr.mxu0 0.0
        %935 = vmatpush1.msra.mxu0 %v900
        %936 = vmatprep.subr.mxu0 0.0
        %937 = vmatpush1.msra.mxu0 %v901
        %938 = vmatprep.subr.mxu0 0.0
        %939 = vmatpush1.msra.mxu0 %v902
        %940 = vmatprep.subr.mxu0 0.0
        %941 = vmatpush1.msra.mxu0 %v903
        %942 = vmatprep.subr.mxu0 0.0
        %943 = vmatpush1.msra.mxu0 %v904
        %944 = vmatprep.subr.mxu0 0.0
        %945 = vmatpush1.msra.mxu0 0.0
        %946 = vmatprep.subr.mxu0 0.0
        %947 = vmatpush1.msra.mxu0 0.0
        %948 = vmatprep.subr.mxu0 0.0
        %949 = vmatpush1.msra.mxu0 0.0
        %950 = vmatprep.subr.mxu0 0.0
        %951 = vmatpush1.msra.mxu0 0.0
        %952 = vmatprep.subr.mxu0 0.0
        %953 = vmatpush1.msra.mxu0 0.0
        %954 = vmatprep.subr.mxu0 0.0
        %955 = vmatpush1.msra.mxu0 0.0
        %956 = vmatprep.subr.mxu0 0.0
        %957 = vmatpush1.msra.mxu0 0.0
        %958 = vmatprep.subr.mxu0 0.0
        %959 = vmatpush1.msra.mxu0 0.0
        %960 = vmatprep.subr.mxu0 0.0
        %961 = vmatpush1.msra.mxu0 0.0
        %962 = vmatprep.subr.mxu0 0.0
        %963 = vmatpush1.msra.mxu0 0.0
        %964 = vmatprep.subr.mxu0 0.0
        %965 = vmatpush1.msra.mxu0 0.0
        %966 = vmatprep.subr.mxu0 0.0
        %967 = vmatpush1.msra.mxu0 0.0
        %968 = vmatprep.subr.mxu0 0.0
        %969 = vmatpush1.msra.mxu0 0.0
        %970 = vmatprep.subr.mxu0 0.0
        %971 = vmatpush1.msra.mxu0 0.0
        %972 = vmatprep.subr.mxu0 0.0
        %973 = vmatpush1.msra.mxu0 0.0
        %974 = vmatprep.subr.mxu0 0.0
        %975 = vmatpush1.msra.mxu0 0.0
        %976 = vmatprep.mubr.f32.mxu0 0.0
        %977 = vmatmul.mubr.f32.gmra.mrb[0].mxu0 %v886
        %v978 = vpop.f32.mrb[0].mxu0
        %v979 = vadd.f32 %v910, %v978
        %v980 = vpop.f32.mrb[0].mxu0
        %981 = vdwg.mxu0
        %982 = vst [vmem:[%s399] sm:$0xff] %v979
        %s983 = sand.u32 %s198, 1
        %s984 = scalar_lea.sflag [#allocation4], %s983
        %s985 = sand.u32 %s198, 1
        %s986 = smul.addr %s985, 8
        %s987 = scalar_lea.vmem [#allocation11], %s986
        // Predicated region
        $region69: #{tpu_custom_call.1} parent=47 // pred_check
          %p988 = pneg %p208
        $region70: #{tpu_custom_call.1} parent=47 // pred_check_branch
          %990 = sbr.rel (%p988) target = $region72
        $region71: #{tpu_custom_call.1} parent=47 // pred_region
          %s992 = ssub.s32 128, 128
          %993 = vsyncadd %s984, %s992
          %s994 = smul.addr %s28, 128
          %s995 = scalar_lea.hbm %s7, %s994
          %s997 = sshll.u32 %s987, 4
          %s998 = int_to_ptr.vmem [resolvable:$true] %s997
          %1000 = dma.vmem_to_hbm [thread:$0]  %s998, 128, %s995, %s984
        $region72: #{tpu_custom_call.1} parent=47 // pred_fallthru
          _
      $region48: #{tpu_custom_call.1} parent=5 // pred_fallthru
        _
      %p1001 = scmp.le.s32.totalorder 2, %s23
      // Predicated region
      $region73: #{tpu_custom_call.1} parent=5 // pred_check
        %p1002 = pneg %p1001
      $region74: #{tpu_custom_call.1} parent=5 // pred_check_branch
        %1004 = sbr.rel (%p1002) target = $region76
      $region75: #{tpu_custom_call.1} parent=5 // pred_region
        %s1005 = ssub.s32 %s23, 2
        // Predicated region
        $region77: #{tpu_custom_call.1} parent=75 // pred_check
          %p1006 = pneg %p214
        $region78: #{tpu_custom_call.1} parent=75 // pred_check_branch
          %1008 = sbr.rel (%p1006) target = $region80
        $region79: #{tpu_custom_call.1} parent=75 // pred_region
          %s1009 = sand.u32 %s199, 1
          %s1010 = scalar_lea.sflag [#allocation4], %s1009
          %s1011 = sand.u32 %s199, 1
          %s1012 = smul.addr %s1011, 8
          %s1013 = scalar_lea.vmem [#allocation11], %s1012
          %1014 = dma.done %s1010, 128
        $region80: #{tpu_custom_call.1} parent=75 // pred_fallthru
          _
      $region76: #{tpu_custom_call.1} parent=5 // pred_fallthru
        _
    $region6: #{tpu_custom_call.1} parent=1 // loop_footer
      %s27 = sadd.s32 1, %s23
    $region7: #{tpu_custom_call.1} parent=1 // loop_footer_branch
      %22 = sbr.rel target = $region3
    $region8: #{tpu_custom_call.1} parent=1 // loop_exit
      _
    %1015 = vsyncpa [#allocation3], 1
    %s1016 = scalar_lea.sflag [#allocation3], 1
    %1017 = vsyncpa %s1016, 1
    %1018 = vsyncpa [#allocation6], 1
    %s1019 = scalar_lea.sflag [#allocation6], 1
    %1020 = vsyncpa %s1019, 1
    %1021 = vsyncpa [#allocation9], 1
    %1022 = vsyncpa [#allocation4], 1
    %s1023 = scalar_lea.sflag [#allocation4], 1
    %1024 = vsyncpa %s1023, 1

</llo_original>
